<compile_context>
chip_gen: v6e
topology: v6e:2x2x1
jax: 0.10.0
libtpu: 0.0.40
codegen_flags: <defaults>
</compile_context>

<pallas_src>
import functools

import jax
import jax.numpy as jnp
from jax.experimental import pallas as pl
from jax.experimental.pallas import tpu as pltpu


NUM_FEATURE = 19
NUM_CLASS = 2
HIDDEN = (36, 72, 144, 72, 36)
BN_EPS = 1e-5
LEAKY_SLOPE = 0.01  # nn.LeakyReLU default

# Sublane-aligned offsets for the packed shift operand (each hidden width padded
# to a multiple of 8 rows so in-kernel static slices start on a sublane boundary).
SHIFT_OFFS = []
_off = 0
for _d in HIDDEN:
    SHIFT_OFFS.append(_off)
    _off += ((_d + 7) // 8) * 8
SHIFT_ROWS = _off  # 368


def _mlp_kernel(x_ref,
                w1_ref, w2_ref, w3_ref, w4_ref, w5_ref, wo_ref,
                s_ref,
                o_ref):
    """One batch tile of the full MLP.  x_ref: (TB, 19) f32, o_ref: (2, TB) f32."""
    w_refs = (w1_ref, w2_ref, w3_ref, w4_ref, w5_ref)

    # Layout change happens in-kernel (XLU), hidden under the MXU: batch on lanes.
    h = jnp.transpose(x_ref[...])  # (19, TB) f32

    for w_ref, d, off in zip(w_refs, HIDDEN, SHIFT_OFFS):
        # Linear (BN scale folded into the bf16 weight rows): bf16 MXU inputs,
        # f32 accumulation.  Then BN shift + LeakyReLU in f32 (v5e-safe).
        h = jnp.dot(w_ref[...], h.astype(jnp.bfloat16),
                    preferred_element_type=jnp.float32)        # (d, TB) f32
        h = h + s_ref[off:off + d, :]                           # (d, 1) over lanes
        h = jnp.maximum(h, LEAKY_SLOPE * h)                     # LeakyReLU, 2 VPU ops
        # dropout: identity (eval)

    logits = jnp.dot(wo_ref[...], h.astype(jnp.bfloat16),
                     preferred_element_type=jnp.float32)        # (2, TB) f32
    o_ref[...] = pl.reciprocal(1.0 + jnp.exp(-logits)).astype(o_ref.dtype)


@functools.partial(jax.jit, static_argnames=("block_batch",))
def multiclass_classification_forward(x, folded_ws, shift_packed, w_out,
                                      block_batch=1024):
    """x: (B, 19) float32 -> (B, 2) float32 (sigmoid probabilities).

    block_batch should stay a multiple of 512 for large B; for v7x pick it so
    there are >= 2 batch tiles at the production batch size (dual TensorCore).
    """
    B = x.shape[0]
    # Small B: use the exact batch as the tile (block == full array dims, legal
    # by the full-dim rule).  Large B: fixed tile, ragged last block is masked.
    tb = min(block_batch, B)
    n_tiles = pl.cdiv(B, tb)

    const_map = lambda i: (0, 0)
    in_specs = [pl.BlockSpec((tb, NUM_FEATURE), lambda i: (i, 0))]   # contiguous x DMA
    for w in (*folded_ws, w_out):
        in_specs.append(pl.BlockSpec(w.shape, const_map))            # VMEM-resident weights
    in_specs.append(pl.BlockSpec(shift_packed.shape, const_map))

    out_t = pl.pallas_call(
        _mlp_kernel,
        out_shape=jax.ShapeDtypeStruct((NUM_CLASS, B), jnp.float32),
        grid=(n_tiles,),
        in_specs=in_specs,
        out_specs=pl.BlockSpec((NUM_CLASS, tb), lambda i: (0, i)),
        compiler_params=pltpu.CompilerParams(
            dimension_semantics=("parallel",)),
    )(x, *folded_ws, w_out, shift_packed)

    return jnp.transpose(out_t)  # (B, 2); tiny, no slicing needed (never padded)


def init_params(seed=1):
    """Deterministic parameter init matching the module's shapes.

    Linear weights: PyTorch-native (out, in), U(-1/sqrt(fan_in), 1/sqrt(fan_in)),
    no bias.  BatchNorm1d: gamma=1, beta=0, running_mean=0, running_var=1.
    """
    dims = (NUM_FEATURE,) + HIDDEN + (NUM_CLASS,)
    keys = jax.random.split(jax.random.PRNGKey(seed), len(dims) - 1)
    weights = []  # (out, in), f32
    for k, d_in, d_out in zip(keys, dims[:-1], dims[1:]):
        bound = 1.0 / jnp.sqrt(d_in)
        w = jax.random.uniform(k, (d_out, d_in), jnp.float32, -bound, bound)
        weights.append(w)

    bn_params = []
    for d in HIDDEN:
        gamma = jnp.ones((d,), jnp.float32)
        beta = jnp.zeros((d,), jnp.float32)
        running_mean = jnp.zeros((d,), jnp.float32)
        running_var = jnp.ones((d,), jnp.float32)
        bn_params.append((gamma, beta, running_mean, running_var))
    return weights, bn_params


def fold_batchnorm(weights, bn_params):
    """Glue (plain JAX): fold eval-mode BN into the (out,in) weights + shifts.

    y = gamma * (W x - mean) / sqrt(var + eps) + beta
      = (W * scale[:, None]) x + (beta - mean * scale),  scale = gamma/sqrt(var+eps)
    Folding is done in f32; the folded weights (and w_out) are stored as bf16 for
    the MXU.  Shifts stay f32, packed into one sublane-aligned (SHIFT_ROWS, 1)
    operand.
    """
    folded_ws = []
    shift_packed = jnp.zeros((SHIFT_ROWS, 1), jnp.float32)
    for w, (gamma, beta, mean, var), d, off in zip(
            weights[:-1], bn_params, HIDDEN, SHIFT_OFFS):
        scale = gamma / jnp.sqrt(var + BN_EPS)
        folded_ws.append((w * scale[:, None]).astype(jnp.bfloat16))
        shift = beta - mean * scale
        shift_packed = shift_packed.at[off:off + d, 0].set(shift)
    w_out = weights[-1].astype(jnp.bfloat16)
    return tuple(folded_ws), shift_packed, w_out


def reference_forward(x, weights, bn_params):
    """Pure-JAX f32 reference of the PyTorch forward (eval mode)."""
    h = x
    for w, (gamma, beta, mean, var) in zip(weights[:-1], bn_params):
        h = h @ w.T
        h = gamma * (h - mean) / jnp.sqrt(var + BN_EPS) + beta
        h = jnp.where(h >= 0, h, LEAKY_SLOPE * h)
    h = h @ weights[-1].T
    return 1.0 / (1.0 + jnp.exp(-h))


if __name__ == "__main__":
    weights, bn_params = init_params(seed=1)
    folded_ws, shift_packed, w_out = fold_batchnorm(weights, bn_params)

    # (B, block_batch): small single-tile, medium single-tile (tb == B), and a
    # multi-tile case with a ragged (masked) last block.
    cases = ((8, 1024), (300, 1024), (300, 128))
    for B, tbb in cases:
        x = jax.random.normal(jax.random.PRNGKey(0), (B, NUM_FEATURE), jnp.float32)
        out = multiclass_classification_forward(x, folded_ws, shift_packed, w_out,
                                                block_batch=tbb)
        out = jax.block_until_ready(out)

        ref = reference_forward(x, weights, bn_params)
        assert out.shape == (B, NUM_CLASS), out.shape
        # bf16 MXU inputs -> relaxed tolerance vs. the f32 reference.
        assert jnp.allclose(out, ref, atol=2e-2, rtol=2e-2), (
            f"B={B} tb={tbb} max abs err {jnp.max(jnp.abs(out - ref))}")

    print("KERNEL_OK")
</pallas_src>

<mosaic_0001>
module attributes {stable_mosaic.version = 11 : i64} {
  func.func @_mlp_kernel(%arg0: i32, %arg1: memref<8x19xf32, #tpu.memory_space<vmem>>, %arg2: memref<36x19xbf16, #tpu.memory_space<vmem>>, %arg3: memref<72x36xbf16, #tpu.memory_space<vmem>>, %arg4: memref<144x72xbf16, #tpu.memory_space<vmem>>, %arg5: memref<72x144xbf16, #tpu.memory_space<vmem>>, %arg6: memref<36x72xbf16, #tpu.memory_space<vmem>>, %arg7: memref<2x36xbf16, #tpu.memory_space<vmem>>, %arg8: memref<368x1xf32, #tpu.memory_space<vmem>>, %arg9: memref<2x8xf32, #tpu.memory_space<vmem>>) attributes {dimension_semantics = [#tpu.dimension_semantics<parallel>], iteration_bounds = array<i64: 1>, scalar_prefetch = 0 : i64, scratch_operands = 0 : i64, tpu.core_type = #tpu.core_type<tc>, window_params = [{transform_indices = @transform_0, window_bounds = array<i64: 8, 19>}, {pipeline_mode = #tpu.pipeline_mode<synchronous>, transform_indices = @transform_1, window_bounds = array<i64: 36, 19>}, {pipeline_mode = #tpu.pipeline_mode<synchronous>, transform_indices = @transform_2, window_bounds = array<i64: 72, 36>}, {pipeline_mode = #tpu.pipeline_mode<synchronous>, transform_indices = @transform_3, window_bounds = array<i64: 144, 72>}, {pipeline_mode = #tpu.pipeline_mode<synchronous>, transform_indices = @transform_4, window_bounds = array<i64: 72, 144>}, {pipeline_mode = #tpu.pipeline_mode<synchronous>, transform_indices = @transform_5, window_bounds = array<i64: 36, 72>}, {pipeline_mode = #tpu.pipeline_mode<synchronous>, transform_indices = @transform_6, window_bounds = array<i64: 2, 36>}, {pipeline_mode = #tpu.pipeline_mode<synchronous>, transform_indices = @transform_7, window_bounds = array<i64: 368, 1>}, {transform_indices = @transform_8, window_bounds = array<i64: 2, 8>}]} {
    %c0 = arith.constant 0 : index
    %c0_0 = arith.constant 0 : index
    %0 = vector.load %arg1[%c0, %c0_0] : memref<8x19xf32, #tpu.memory_space<vmem>>, vector<8x19xf32>
    %1 = tpu.transpose %0, [1, 0] : vector<8x19xf32> -> vector<19x8xf32>
    %c0_1 = arith.constant 0 : index
    %c0_2 = arith.constant 0 : index
    %2 = vector.load %arg2[%c0_1, %c0_2] : memref<36x19xbf16, #tpu.memory_space<vmem>>, vector<36x19xbf16>
    %3 = arith.truncf %1 : vector<19x8xf32> to vector<19x8xbf16>
    %cst = arith.constant dense<0.000000e+00> : vector<36x8xf32>
    %4 = tpu.matmul %2, %3, %cst {dimension_numbers = #tpu.dot_dimension_numbers<[1], [0], [0], [1], [0, 0, 1, 1], [], []>} : vector<36x19xbf16>, vector<19x8xbf16>, vector<36x8xf32> -> vector<36x8xf32>
    %c0_3 = arith.constant 0 : index
    %c0_4 = arith.constant 0 : index
    %5 = vector.load %arg8[%c0_3, %c0_4] : memref<368x1xf32, #tpu.memory_space<vmem>>, vector<36x1xf32>
    %6 = vector.broadcast %5 : vector<36x1xf32> to vector<36x8xf32>
    %7 = arith.addf %4, %6 : vector<36x8xf32>
    %cst_5 = arith.constant 0.00999999977 : f32
    %8 = vector.broadcast %cst_5 : f32 to vector<36x8xf32>
    %9 = arith.mulf %8, %7 : vector<36x8xf32>
    %10 = arith.maximumf %7, %9 : vector<36x8xf32>
    %c0_6 = arith.constant 0 : index
    %c0_7 = arith.constant 0 : index
    %11 = vector.load %arg3[%c0_6, %c0_7] : memref<72x36xbf16, #tpu.memory_space<vmem>>, vector<72x36xbf16>
    %12 = arith.truncf %10 : vector<36x8xf32> to vector<36x8xbf16>
    %cst_8 = arith.constant dense<0.000000e+00> : vector<72x8xf32>
    %13 = tpu.matmul %11, %12, %cst_8 {dimension_numbers = #tpu.dot_dimension_numbers<[1], [0], [0], [1], [0, 0, 1, 1], [], []>} : vector<72x36xbf16>, vector<36x8xbf16>, vector<72x8xf32> -> vector<72x8xf32>
    %c40 = arith.constant 40 : index
    %c0_9 = arith.constant 0 : index
    %14 = vector.load %arg8[%c40, %c0_9] : memref<368x1xf32, #tpu.memory_space<vmem>>, vector<72x1xf32>
    %15 = vector.broadcast %14 : vector<72x1xf32> to vector<72x8xf32>
    %16 = arith.addf %13, %15 : vector<72x8xf32>
    %cst_10 = arith.constant 0.00999999977 : f32
    %17 = vector.broadcast %cst_10 : f32 to vector<72x8xf32>
    %18 = arith.mulf %17, %16 : vector<72x8xf32>
    %19 = arith.maximumf %16, %18 : vector<72x8xf32>
    %c0_11 = arith.constant 0 : index
    %c0_12 = arith.constant 0 : index
    %20 = vector.load %arg4[%c0_11, %c0_12] : memref<144x72xbf16, #tpu.memory_space<vmem>>, vector<144x72xbf16>
    %21 = arith.truncf %19 : vector<72x8xf32> to vector<72x8xbf16>
    %cst_13 = arith.constant dense<0.000000e+00> : vector<144x8xf32>
    %22 = tpu.matmul %20, %21, %cst_13 {dimension_numbers = #tpu.dot_dimension_numbers<[1], [0], [0], [1], [0, 0, 1, 1], [], []>} : vector<144x72xbf16>, vector<72x8xbf16>, vector<144x8xf32> -> vector<144x8xf32>
    %c112 = arith.constant 112 : index
    %c0_14 = arith.constant 0 : index
    %23 = vector.load %arg8[%c112, %c0_14] : memref<368x1xf32, #tpu.memory_space<vmem>>, vector<144x1xf32>
    %24 = vector.broadcast %23 : vector<144x1xf32> to vector<144x8xf32>
    %25 = arith.addf %22, %24 : vector<144x8xf32>
    %cst_15 = arith.constant 0.00999999977 : f32
    %26 = vector.broadcast %cst_15 : f32 to vector<144x8xf32>
    %27 = arith.mulf %26, %25 : vector<144x8xf32>
    %28 = arith.maximumf %25, %27 : vector<144x8xf32>
    %c0_16 = arith.constant 0 : index
    %c0_17 = arith.constant 0 : index
    %29 = vector.load %arg5[%c0_16, %c0_17] : memref<72x144xbf16, #tpu.memory_space<vmem>>, vector<72x144xbf16>
    %30 = arith.truncf %28 : vector<144x8xf32> to vector<144x8xbf16>
    %cst_18 = arith.constant dense<0.000000e+00> : vector<72x8xf32>
    %31 = tpu.matmul %29, %30, %cst_18 {dimension_numbers = #tpu.dot_dimension_numbers<[1], [0], [0], [1], [0, 0, 1, 1], [], []>} : vector<72x144xbf16>, vector<144x8xbf16>, vector<72x8xf32> -> vector<72x8xf32>
    %c256 = arith.constant 256 : index
    %c0_19 = arith.constant 0 : index
    %32 = vector.load %arg8[%c256, %c0_19] : memref<368x1xf32, #tpu.memory_space<vmem>>, vector<72x1xf32>
    %33 = vector.broadcast %32 : vector<72x1xf32> to vector<72x8xf32>
    %34 = arith.addf %31, %33 : vector<72x8xf32>
    %cst_20 = arith.constant 0.00999999977 : f32
    %35 = vector.broadcast %cst_20 : f32 to vector<72x8xf32>
    %36 = arith.mulf %35, %34 : vector<72x8xf32>
    %37 = arith.maximumf %34, %36 : vector<72x8xf32>
    %c0_21 = arith.constant 0 : index
    %c0_22 = arith.constant 0 : index
    %38 = vector.load %arg6[%c0_21, %c0_22] : memref<36x72xbf16, #tpu.memory_space<vmem>>, vector<36x72xbf16>
    %39 = arith.truncf %37 : vector<72x8xf32> to vector<72x8xbf16>
    %cst_23 = arith.constant dense<0.000000e+00> : vector<36x8xf32>
    %40 = tpu.matmul %38, %39, %cst_23 {dimension_numbers = #tpu.dot_dimension_numbers<[1], [0], [0], [1], [0, 0, 1, 1], [], []>} : vector<36x72xbf16>, vector<72x8xbf16>, vector<36x8xf32> -> vector<36x8xf32>
    %c328 = arith.constant 328 : index
    %c0_24 = arith.constant 0 : index
    %41 = vector.load %arg8[%c328, %c0_24] : memref<368x1xf32, #tpu.memory_space<vmem>>, vector<36x1xf32>
    %42 = vector.broadcast %41 : vector<36x1xf32> to vector<36x8xf32>
    %43 = arith.addf %40, %42 : vector<36x8xf32>
    %cst_25 = arith.constant 0.00999999977 : f32
    %44 = vector.broadcast %cst_25 : f32 to vector<36x8xf32>
    %45 = arith.mulf %44, %43 : vector<36x8xf32>
    %46 = arith.maximumf %43, %45 : vector<36x8xf32>
    %c0_26 = arith.constant 0 : index
    %c0_27 = arith.constant 0 : index
    %47 = vector.load %arg7[%c0_26, %c0_27] : memref<2x36xbf16, #tpu.memory_space<vmem>>, vector<2x36xbf16>
    %48 = arith.truncf %46 : vector<36x8xf32> to vector<36x8xbf16>
    %cst_28 = arith.constant dense<0.000000e+00> : vector<2x8xf32>
    %49 = tpu.matmul %47, %48, %cst_28 {dimension_numbers = #tpu.dot_dimension_numbers<[1], [0], [0], [1], [0, 0, 1, 1], [], []>} : vector<2x36xbf16>, vector<36x8xbf16>, vector<2x8xf32> -> vector<2x8xf32>
    %cst_29 = arith.constant 0.000000e+00 : f32
    %50 = vector.broadcast %cst_29 : f32 to vector<2x8xf32>
    %51 = arith.subf %50, %49 : vector<2x8xf32>
    %52 = math.exp %51 : vector<2x8xf32>
    %cst_30 = arith.constant 1.000000e+00 : f32
    %53 = vector.broadcast %cst_30 : f32 to vector<2x8xf32>
    %54 = arith.addf %53, %52 : vector<2x8xf32>
    %55 = tpu.reciprocal %54 : vector<2x8xf32> -> vector<2x8xf32>
    %c0_31 = arith.constant 0 : index
    %c0_32 = arith.constant 0 : index
    %56 = vector.load %arg9[%c0_31, %c0_32] : memref<2x8xf32, #tpu.memory_space<vmem>>, vector<2x8xf32>
    tpu.vector_store %arg9[%c0_31, %c0_32], %55 {strides = array<i32>} : memref<2x8xf32, #tpu.memory_space<vmem>>, vector<2x8xf32>,
    return
  }
  func.func @transform_0(%arg0: i32) -> (i32, i32) {
    %c0_i32 = arith.constant 0 : i32
    %c0_i32_0 = arith.constant 0 : i32
    return %arg0, %c0_i32 : i32, i32
  }
  func.func @transform_1(%arg0: i32) -> (i32, i32) {
    %c0_i32 = arith.constant 0 : i32
    %c0_i32_0 = arith.constant 0 : i32
    %c0_i32_1 = arith.constant 0 : i32
    return %c0_i32, %c0_i32_0 : i32, i32
  }
  func.func @transform_2(%arg0: i32) -> (i32, i32) {
    %c0_i32 = arith.constant 0 : i32
    %c0_i32_0 = arith.constant 0 : i32
    %c0_i32_1 = arith.constant 0 : i32
    return %c0_i32, %c0_i32_0 : i32, i32
  }
  func.func @transform_3(%arg0: i32) -> (i32, i32) {
    %c0_i32 = arith.constant 0 : i32
    %c0_i32_0 = arith.constant 0 : i32
    %c0_i32_1 = arith.constant 0 : i32
    return %c0_i32, %c0_i32_0 : i32, i32
  }
  func.func @transform_4(%arg0: i32) -> (i32, i32) {
    %c0_i32 = arith.constant 0 : i32
    %c0_i32_0 = arith.constant 0 : i32
    %c0_i32_1 = arith.constant 0 : i32
    return %c0_i32, %c0_i32_0 : i32, i32
  }
  func.func @transform_5(%arg0: i32) -> (i32, i32) {
    %c0_i32 = arith.constant 0 : i32
    %c0_i32_0 = arith.constant 0 : i32
    %c0_i32_1 = arith.constant 0 : i32
    return %c0_i32, %c0_i32_0 : i32, i32
  }
  func.func @transform_6(%arg0: i32) -> (i32, i32) {
    %c0_i32 = arith.constant 0 : i32
    %c0_i32_0 = arith.constant 0 : i32
    %c0_i32_1 = arith.constant 0 : i32
    return %c0_i32, %c0_i32_0 : i32, i32
  }
  func.func @transform_7(%arg0: i32) -> (i32, i32) {
    %c0_i32 = arith.constant 0 : i32
    %c0_i32_0 = arith.constant 0 : i32
    %c0_i32_1 = arith.constant 0 : i32
    return %c0_i32, %c0_i32_0 : i32, i32
  }
  func.func @transform_8(%arg0: i32) -> (i32, i32) {
    %c0_i32 = arith.constant 0 : i32
    %c0_i32_0 = arith.constant 0 : i32
    return %c0_i32, %arg0 : i32, i32
  }
}

</mosaic_0001>

<llo_original>
// kernel: multiclass_classification_forward.1
$region0: #{multiclass_classification_forward.1}
  #allocation0 [shape = 'u32[]', space=smem, size = 0x4, offset = 0x4, fixed_abs, tag = 'smem constant byte address 0x4 - core index']
  #allocation1 [shape = 'u32[144,128]{1,0:T(1,128)}', space=vmem, size = 0x12000, scoped, tag = 'internal scratch']
  %s0 = inlined_call_operand.vmem [shape: f32[8,19], index: 0, kind: input, shape index: {}]
  %s1 = inlined_call_operand.vmem [shape: bf16[36,19], index: 1, kind: input, shape index: {}]
  %s2 = inlined_call_operand.vmem [shape: bf16[72,36], index: 2, kind: input, shape index: {}]
  %s3 = inlined_call_operand.vmem [shape: bf16[144,72], index: 3, kind: input, shape index: {}]
  %s4 = inlined_call_operand.vmem [shape: bf16[72,144], index: 4, kind: input, shape index: {}]
  %s5 = inlined_call_operand.vmem [shape: bf16[36,72], index: 5, kind: input, shape index: {}]
  %s6 = inlined_call_operand.vmem [shape: bf16[2,36], index: 6, kind: input, shape index: {}]
  %s7 = inlined_call_operand.vmem [shape: f32[368,1], index: 7, kind: input, shape index: {}]
  %s8 = inlined_call_operand.hbm [shape: f32[2,8], index: 8, kind: output, shape index: {}]
  %s9 = sld [smem:[#allocation0]]
  $region42: #{multiclass_classification_forward.1} parent=0
    _
  %s11 = ssub.s32 1, %s9
  %s12 = scalar_select 0, %s11, %s9
  $region1: #{multiclass_classification_forward.1} parent=0
    #allocation2 [shape = 'u8[1024]{0}', space=vmem, size = 0x400, scoped, tag = 'output window, operand 0, single buffered']
    #allocation3 [shape = 's32[1]{0}', space=sflag, size = 0x4, scoped, tag = 'scoped memory for multiclass_classification_forward.1']
    %13 = vsyncpa [#allocation3], 0
    // Predicated region
    $region2: #{multiclass_classification_forward.1} parent=1 // pred_check
      _
    $region3: #{multiclass_classification_forward.1} parent=1 // pred_check_branch
      %15 = sbr.rel (0) target = $region5
    $region4: #{multiclass_classification_forward.1} parent=1 // pred_region
      _
    $region5: #{multiclass_classification_forward.1} parent=1 // pred_fallthru
      _
    // Predicated region
    $region6: #{multiclass_classification_forward.1} parent=1 // pred_check
      _
    $region7: #{multiclass_classification_forward.1} parent=1 // pred_check_branch
      %17 = sbr.rel (0) target = $region9
    $region8: #{multiclass_classification_forward.1} parent=1 // pred_region
      _
    $region9: #{multiclass_classification_forward.1} parent=1 // pred_fallthru
      _
    // Predicated region
    $region10: #{multiclass_classification_forward.1} parent=1 // pred_check
      _
    $region11: #{multiclass_classification_forward.1} parent=1 // pred_check_branch
      %19 = sbr.rel (0) target = $region13
    $region12: #{multiclass_classification_forward.1} parent=1 // pred_region
      _
    $region13: #{multiclass_classification_forward.1} parent=1 // pred_fallthru
      _
    // Predicated region
    $region14: #{multiclass_classification_forward.1} parent=1 // pred_check
      _
    $region15: #{multiclass_classification_forward.1} parent=1 // pred_check_branch
      %21 = sbr.rel (0) target = $region17
    $region16: #{multiclass_classification_forward.1} parent=1 // pred_region
      _
    $region17: #{multiclass_classification_forward.1} parent=1 // pred_fallthru
      _
    // Predicated region
    $region18: #{multiclass_classification_forward.1} parent=1 // pred_check
      _
    $region19: #{multiclass_classification_forward.1} parent=1 // pred_check_branch
      %23 = sbr.rel (0) target = $region21
    $region20: #{multiclass_classification_forward.1} parent=1 // pred_region
      _
    $region21: #{multiclass_classification_forward.1} parent=1 // pred_fallthru
      _
    // Predicated region
    $region22: #{multiclass_classification_forward.1} parent=1 // pred_check
      _
    $region23: #{multiclass_classification_forward.1} parent=1 // pred_check_branch
      %25 = sbr.rel (0) target = $region25
    $region24: #{multiclass_classification_forward.1} parent=1 // pred_region
      _
    $region25: #{multiclass_classification_forward.1} parent=1 // pred_fallthru
      _
    // Predicated region
    $region26: #{multiclass_classification_forward.1} parent=1 // pred_check
      _
    $region27: #{multiclass_classification_forward.1} parent=1 // pred_check_branch
      %27 = sbr.rel (0) target = $region29
    $region28: #{multiclass_classification_forward.1} parent=1 // pred_region
      _
    $region29: #{multiclass_classification_forward.1} parent=1 // pred_fallthru
      _
    // Predicated region
    $region30: #{multiclass_classification_forward.1} parent=1 // pred_check
      _
    $region31: #{multiclass_classification_forward.1} parent=1 // pred_check_branch
      %29 = sbr.rel (0) target = $region33
    $region32: #{multiclass_classification_forward.1} parent=1 // pred_region
      _
    $region33: #{multiclass_classification_forward.1} parent=1 // pred_fallthru
      _
    %v31 = vld [vmem:[%s0] sm:$0xff]
    %32 = vxpose.xlu0.b32.start [1/16] %v31, 128
    %33 = vxpose.xlu0.b32.cont [2/16] 0.0, 128
    %34 = vxpose.xlu0.b32.cont [3/16] 0.0, 128
    %35 = vxpose.xlu0.b32.cont [4/16] 0.0, 128
    %36 = vxpose.xlu0.b32.cont [5/16] 0.0, 128
    %37 = vxpose.xlu0.b32.cont [6/16] 0.0, 128
    %38 = vxpose.xlu0.b32.cont [7/16] 0.0, 128
    %39 = vxpose.xlu0.b32.cont [8/16] 0.0, 128
    %40 = vxpose.xlu0.b32.cont [9/16] 0.0, 128
    %41 = vxpose.xlu0.b32.cont [10/16] 0.0, 128
    %42 = vxpose.xlu0.b32.cont [11/16] 0.0, 128
    %43 = vxpose.xlu0.b32.cont [12/16] 0.0, 128
    %44 = vxpose.xlu0.b32.cont [13/16] 0.0, 128
    %45 = vxpose.xlu0.b32.cont [14/16] 0.0, 128
    %46 = vxpose.xlu0.b32.cont [15/16] 0.0, 128
    %47 = vxpose.xlu0.b32.end [16/16] 0.0, 128
    %v48 = vpop.trf.xlu0
    %v49 = vpop.trf.xlu0
    %v50 = vpop.trf.xlu0
    %v51 = vpop.trf.xlu0
    %v52 = vpop.trf.xlu0
    %v53 = vpop.trf.xlu0
    %v54 = vpop.trf.xlu0
    %v55 = vpop.trf.xlu0
    %v56 = vpop.trf.xlu0
    %v57 = vpop.trf.xlu0
    %v58 = vpop.trf.xlu0
    %v59 = vpop.trf.xlu0
    %v60 = vpop.trf.xlu0
    %v61 = vpop.trf.xlu0
    %v62 = vpop.trf.xlu0
    %v63 = vpop.trf.xlu0
    %v64 = vld [vmem:[%s1] sm:$0xf]
    %v65 = vld [vmem:[%s1 + $0x4] sm:$0xf]
    %v66 = vld [vmem:[%s1 + $0x8] sm:$0xf]
    %v67 = vld [vmem:[%s1 + $0xc] sm:$0xf]
    %v68 = vld [vmem:[%s1 + $0x10] sm:$0x3]
    %v69 = vpack.c.bf16 %v49, %v48
    %v70 = vpack.c.bf16 %v50, %v50
    %v71 = vld [vmem:[%s7] sm:$0xff]
    %v72 = vld [vmem:[%s7 + $0x8] sm:$0xff]
    %v73 = vld [vmem:[%s7 + $0x10] sm:$0xff]
    %v74 = vld [vmem:[%s7 + $0x18] sm:$0xff]
    %v75 = vld [vmem:[%s7 + $0x20] sm:$0xf]
    %77 = vset.pattern.permute.xlu0 0
    %78 = vperm.xlu0 %77, %v71
    %v79 = vpop.permute.xlu0 %78
    %82 = vset.pattern.permute.xlu0 0
    %83 = vperm.xlu0 %82, %v72
    %v84 = vpop.permute.xlu0 %83
    %87 = vset.pattern.permute.xlu0 0
    %88 = vperm.xlu0 %87, %v73
    %v89 = vpop.permute.xlu0 %88
    %92 = vset.pattern.permute.xlu0 0
    %93 = vperm.xlu0 %92, %v74
    %v94 = vpop.permute.xlu0 %93
    %97 = vset.pattern.permute.xlu0 0
    %98 = vperm.xlu0 %97, %v75
    %v99 = vpop.permute.xlu0 %98
    %v106 = vunpack.c.l.b16 %v64
    %v107 = vunpack.c.l.b16 %v65
    %v108 = vunpack.c.l.b16 %v66
    %v109 = vunpack.c.l.b16 %v67
    %v110 = vunpack.c.l.b16 %v68
    %v111 = vpack.c.b16 %v107, %v106
    %v112 = vpack.c.b16 %v109, %v108
    %v113 = vpack.c.b16 %v110, %v110
    %vm114 = vcmask 154624
    %v116 = vsel %vm114, %v111, 0
    %v119 = vsel %vm114, %v112, 0
    %v122 = vsel %vm114, %v113, 0
    %vm124 = vcmask 1040384
    %vm125 = vcmask 1041408
    %v126 = vsel %vm124, 4294967295, 65535
    %v127 = vsel %vm125, %v126, 0
    %v129 = vand.u32 %v70, %v127
    %131 = vmatprep.subr.bf16.mxu0 0
    %132 = vmatpush1.bf16.msra.mxu0 0
    %133 = vmatprep.subr.bf16.mxu0 0
    %134 = vmatpush1.bf16.msra.mxu0 0
    %135 = vmatprep.subr.bf16.mxu0 0
    %136 = vmatpush1.bf16.msra.mxu0 0
    %137 = vmatprep.subr.bf16.mxu0 0
    %138 = vmatpush1.bf16.msra.mxu0 0
    %139 = vmatprep.subr.bf16.mxu0 0
    %140 = vmatpush1.bf16.msra.mxu0 0
    %141 = vmatprep.subr.bf16.mxu0 0
    %142 = vmatpush1.bf16.msra.mxu0 0
    %143 = vmatprep.subr.bf16.mxu0 0
    %144 = vmatpush1.bf16.msra.mxu0 %v129
    %145 = vmatprep.subr.bf16.mxu0 0
    %146 = vmatpush1.bf16.msra.mxu0 %v69
    %147 = vmatprep.subr.bf16.mxu0 0
    %148 = vmatpush2.bf16.msra.mxu0 0
    %149 = vmatprep.subr.bf16.mxu0 0
    %150 = vmatpush2.bf16.msra.mxu0 0
    %151 = vmatprep.subr.bf16.mxu0 0
    %152 = vmatpush2.bf16.msra.mxu0 0
    %153 = vmatprep.subr.bf16.mxu0 0
    %154 = vmatpush2.bf16.msra.mxu0 0
    %155 = vmatprep.subr.bf16.mxu0 0
    %156 = vmatpush2.bf16.msra.mxu0 0
    %157 = vmatprep.subr.bf16.mxu0 0
    %158 = vmatpush2.bf16.msra.mxu0 0
    %159 = vmatprep.subr.bf16.mxu0 0
    %160 = vmatpush2.bf16.msra.mxu0 0
    %161 = vmatprep.subr.bf16.mxu0 0
    %162 = vmatpush2.bf16.msra.mxu0 0
    %163 = vmatprep.mubr.bf16.mxu0 0
    %164 = vmatmul.mubr.bf16.gmra.mxu0 %v116
    %v165 = vpop.f32.mrf.mxu0
    %v166 = vadd.f32 %v79, %v165
    %v167 = vpop.f32.mrf.mxu0
    %v168 = vpop.f32.mrf.mxu0
    %v169 = vadd.f32 %v84, %v168
    %v170 = vpop.f32.mrf.mxu0
    %171 = vmatprep.mubr.bf16.mxu0 0
    %172 = vmatmul.mubr.bf16.gmra.mxu0 %v119
    %v173 = vpop.f32.mrf.mxu0
    %v174 = vadd.f32 %v89, %v173
    %v175 = vpop.f32.mrf.mxu0
    %v176 = vpop.f32.mrf.mxu0
    %v177 = vadd.f32 %v94, %v176
    %v178 = vpop.f32.mrf.mxu0
    %179 = vmatprep.mubr.bf16.mxu0 0
    %180 = vmatmul.mubr.bf16.gmra.mxu0 %v122
    %v181 = vpop.f32.mrf.mxu0
    %v182 = vadd.f32 %v99, %v181
    %v183 = vpop.f32.mrf.mxu0
    %v184 = vpop.f32.mrf.mxu0
    %v185 = vpop.f32.mrf.mxu0
    %186 = vdwg.mxu0
    %v187 = vmul.f32 %v166, 0.01
    %v188 = vmul.f32 %v169, 0.01
    %v189 = vmul.f32 %v174, 0.01
    %v190 = vmul.f32 %v177, 0.01
    %v191 = vmul.f32 %v182, 0.01
    %v192 = vmax.f32 %v166, %v187
    %v193 = vmax.f32 %v169, %v188
    %v194 = vmax.f32 %v174, %v189
    %v195 = vmax.f32 %v177, %v190
    %v196 = vmax.f32 %v182, %v191
    %v197 = vld [vmem:[%s2] sm:$0xf]
    %v198 = vld [vmem:[%s2 + $0x4] sm:$0xf]
    %v199 = vld [vmem:[%s2 + $0x8] sm:$0xf]
    %v200 = vld [vmem:[%s2 + $0xc] sm:$0xf]
    %v201 = vld [vmem:[%s2 + $0x10] sm:$0xf]
    %v202 = vld [vmem:[%s2 + $0x14] sm:$0xf]
    %v203 = vld [vmem:[%s2 + $0x18] sm:$0xf]
    %v204 = vld [vmem:[%s2 + $0x1c] sm:$0xf]
    %v205 = vld [vmem:[%s2 + $0x20] sm:$0xf]
    %v206 = vpack.c.bf16 %v193, %v192
    %v207 = vpack.c.bf16 %v195, %v194
    %v208 = vpack.c.bf16 %v196, %v196
    %v209 = vld [vmem:[%s7 + $0x28] sm:$0xff]
    %v210 = vld [vmem:[%s7 + $0x30] sm:$0xff]
    %v211 = vld [vmem:[%s7 + $0x38] sm:$0xff]
    %v212 = vld [vmem:[%s7 + $0x40] sm:$0xff]
    %v213 = vld [vmem:[%s7 + $0x48] sm:$0xff]
    %v214 = vld [vmem:[%s7 + $0x50] sm:$0xff]
    %v215 = vld [vmem:[%s7 + $0x58] sm:$0xff]
    %v216 = vld [vmem:[%s7 + $0x60] sm:$0xff]
    %v217 = vld [vmem:[%s7 + $0x68] sm:$0xff]
    %219 = vset.pattern.permute.xlu0 0
    %220 = vperm.xlu0 %219, %v209
    %v221 = vpop.permute.xlu0 %220
    %224 = vset.pattern.permute.xlu0 0
    %225 = vperm.xlu0 %224, %v210
    %v226 = vpop.permute.xlu0 %225
    %229 = vset.pattern.permute.xlu0 0
    %230 = vperm.xlu0 %229, %v211
    %v231 = vpop.permute.xlu0 %230
    %234 = vset.pattern.permute.xlu0 0
    %235 = vperm.xlu0 %234, %v212
    %v236 = vpop.permute.xlu0 %235
    %239 = vset.pattern.permute.xlu0 0
    %240 = vperm.xlu0 %239, %v213
    %v241 = vpop.permute.xlu0 %240
    %244 = vset.pattern.permute.xlu0 0
    %245 = vperm.xlu0 %244, %v214
    %v246 = vpop.permute.xlu0 %245
    %249 = vset.pattern.permute.xlu0 0
    %250 = vperm.xlu0 %249, %v215
    %v251 = vpop.permute.xlu0 %250
    %254 = vset.pattern.permute.xlu0 0
    %255 = vperm.xlu0 %254, %v216
    %v256 = vpop.permute.xlu0 %255
    %259 = vset.pattern.permute.xlu0 0
    %260 = vperm.xlu0 %259, %v217
    %v261 = vpop.permute.xlu0 %260
    %v272 = vunpack.c.l.b16 %v197
    %v273 = vunpack.c.l.b16 %v198
    %v274 = vunpack.c.l.b16 %v199
    %v275 = vunpack.c.l.b16 %v200
    %v276 = vunpack.c.l.b16 %v201
    %v277 = vunpack.c.l.b16 %v202
    %v278 = vunpack.c.l.b16 %v203
    %v279 = vunpack.c.l.b16 %v204
    %v280 = vunpack.c.l.b16 %v205
    %v281 = vpack.c.b16 %v273, %v272
    %v282 = vpack.c.b16 %v275, %v274
    %v283 = vpack.c.b16 %v277, %v276
    %v284 = vpack.c.b16 %v279, %v278
    %v285 = vpack.c.b16 %v280, %v280
    %vm286 = vcmask 293888
    %v288 = vsel %vm286, %v281, 0
    %v291 = vsel %vm286, %v282, 0
    %v294 = vsel %vm286, %v283, 0
    %v297 = vsel %vm286, %v284, 0
    %v300 = vsel %vm286, %v285, 0
    %v303 = vsel %vm125, %v208, 0
    %305 = vmatprep.subr.bf16.mxu0 0
    %306 = vmatpush1.bf16.msra.mxu0 0
    %307 = vmatprep.subr.bf16.mxu0 0
    %308 = vmatpush1.bf16.msra.mxu0 0
    %309 = vmatprep.subr.bf16.mxu0 0
    %310 = vmatpush1.bf16.msra.mxu0 0
    %311 = vmatprep.subr.bf16.mxu0 0
    %312 = vmatpush1.bf16.msra.mxu0 0
    %313 = vmatprep.subr.bf16.mxu0 0
    %314 = vmatpush1.bf16.msra.mxu0 0
    %315 = vmatprep.subr.bf16.mxu0 0
    %316 = vmatpush1.bf16.msra.mxu0 %v303
    %317 = vmatprep.subr.bf16.mxu0 0
    %318 = vmatpush1.bf16.msra.mxu0 %v207
    %319 = vmatprep.subr.bf16.mxu0 0
    %320 = vmatpush1.bf16.msra.mxu0 %v206
    %321 = vmatprep.subr.bf16.mxu0 0
    %322 = vmatpush2.bf16.msra.mxu0 0
    %323 = vmatprep.subr.bf16.mxu0 0
    %324 = vmatpush2.bf16.msra.mxu0 0
    %325 = vmatprep.subr.bf16.mxu0 0
    %326 = vmatpush2.bf16.msra.mxu0 0
    %327 = vmatprep.subr.bf16.mxu0 0
    %328 = vmatpush2.bf16.msra.mxu0 0
    %329 = vmatprep.subr.bf16.mxu0 0
    %330 = vmatpush2.bf16.msra.mxu0 0
    %331 = vmatprep.subr.bf16.mxu0 0
    %332 = vmatpush2.bf16.msra.mxu0 0
    %333 = vmatprep.subr.bf16.mxu0 0
    %334 = vmatpush2.bf16.msra.mxu0 0
    %335 = vmatprep.subr.bf16.mxu0 0
    %336 = vmatpush2.bf16.msra.mxu0 0
    %337 = vmatprep.mubr.bf16.mxu0 0
    %338 = vmatmul.mubr.bf16.gmra.mxu0 %v288
    %v339 = vpop.f32.mrf.mxu0
    %v340 = vadd.f32 %v221, %v339
    %v341 = vpop.f32.mrf.mxu0
    %v342 = vpop.f32.mrf.mxu0
    %v343 = vadd.f32 %v226, %v342
    %v344 = vpop.f32.mrf.mxu0
    %345 = vmatprep.mubr.bf16.mxu0 0
    %346 = vmatmul.mubr.bf16.gmra.mxu0 %v291
    %v347 = vpop.f32.mrf.mxu0
    %v348 = vadd.f32 %v231, %v347
    %v349 = vpop.f32.mrf.mxu0
    %v350 = vpop.f32.mrf.mxu0
    %v351 = vadd.f32 %v236, %v350
    %v352 = vpop.f32.mrf.mxu0
    %353 = vmatprep.mubr.bf16.mxu0 0
    %354 = vmatmul.mubr.bf16.gmra.mxu0 %v294
    %v355 = vpop.f32.mrf.mxu0
    %v356 = vadd.f32 %v241, %v355
    %v357 = vpop.f32.mrf.mxu0
    %v358 = vpop.f32.mrf.mxu0
    %v359 = vadd.f32 %v246, %v358
    %v360 = vpop.f32.mrf.mxu0
    %361 = vmatprep.mubr.bf16.mxu0 0
    %362 = vmatmul.mubr.bf16.gmra.mxu0 %v297
    %v363 = vpop.f32.mrf.mxu0
    %v364 = vadd.f32 %v251, %v363
    %v365 = vpop.f32.mrf.mxu0
    %v366 = vpop.f32.mrf.mxu0
    %v367 = vadd.f32 %v256, %v366
    %v368 = vpop.f32.mrf.mxu0
    %369 = vmatprep.mubr.bf16.mxu0 0
    %370 = vmatmul.mubr.bf16.gmra.mxu0 %v300
    %v371 = vpop.f32.mrf.mxu0
    %v372 = vadd.f32 %v261, %v371
    %v373 = vpop.f32.mrf.mxu0
    %v374 = vpop.f32.mrf.mxu0
    %v375 = vpop.f32.mrf.mxu0
    %376 = vdwg.mxu0
    %v377 = vmul.f32 %v340, 0.01
    %v378 = vmul.f32 %v343, 0.01
    %v379 = vmul.f32 %v348, 0.01
    %v380 = vmul.f32 %v351, 0.01
    %v381 = vmul.f32 %v356, 0.01
    %v382 = vmul.f32 %v359, 0.01
    %v383 = vmul.f32 %v364, 0.01
    %v384 = vmul.f32 %v367, 0.01
    %v385 = vmul.f32 %v372, 0.01
    %v386 = vmax.f32 %v340, %v377
    %v387 = vmax.f32 %v343, %v378
    %v388 = vmax.f32 %v348, %v379
    %v389 = vmax.f32 %v351, %v380
    %v390 = vmax.f32 %v356, %v381
    %v391 = vmax.f32 %v359, %v382
    %v392 = vmax.f32 %v364, %v383
    %v393 = vmax.f32 %v367, %v384
    %v394 = vmax.f32 %v372, %v385
    %v395 = vld [vmem:[%s3] sm:$0xf]
    %v396 = vld [vmem:[%s3 + $0x4] sm:$0xf]
    %v397 = vld [vmem:[%s3 + $0x8] sm:$0xf]
    %v398 = vld [vmem:[%s3 + $0xc] sm:$0xf]
    %v399 = vld [vmem:[%s3 + $0x10] sm:$0xf]
    %v400 = vld [vmem:[%s3 + $0x14] sm:$0xf]
    %v401 = vld [vmem:[%s3 + $0x18] sm:$0xf]
    %v402 = vld [vmem:[%s3 + $0x1c] sm:$0xf]
    %v403 = vld [vmem:[%s3 + $0x20] sm:$0xf]
    %v404 = vld [vmem:[%s3 + $0x24] sm:$0xf]
    %v405 = vld [vmem:[%s3 + $0x28] sm:$0xf]
    %v406 = vld [vmem:[%s3 + $0x2c] sm:$0xf]
    %v407 = vld [vmem:[%s3 + $0x30] sm:$0xf]
    %v408 = vld [vmem:[%s3 + $0x34] sm:$0xf]
    %v409 = vld [vmem:[%s3 + $0x38] sm:$0xf]
    %v410 = vld [vmem:[%s3 + $0x3c] sm:$0xf]
    %v411 = vld [vmem:[%s3 + $0x40] sm:$0xf]
    %v412 = vld [vmem:[%s3 + $0x44] sm:$0xf]
    %v413 = vpack.c.bf16 %v387, %v386
    %v414 = vpack.c.bf16 %v389, %v388
    %v415 = vpack.c.bf16 %v391, %v390
    %v416 = vpack.c.bf16 %v393, %v392
    %v417 = vpack.c.bf16 %v394, %v394
    %v418 = vld [vmem:[%s7 + $0x70] sm:$0xff]
    %v419 = vld [vmem:[%s7 + $0x78] sm:$0xff]
    %v420 = vld [vmem:[%s7 + $0x80] sm:$0xff]
    %v421 = vld [vmem:[%s7 + $0x88] sm:$0xff]
    %v422 = vld [vmem:[%s7 + $0x90] sm:$0xff]
    %v423 = vld [vmem:[%s7 + $0x98] sm:$0xff]
    %v424 = vld [vmem:[%s7 + $0xa0] sm:$0xff]
    %v425 = vld [vmem:[%s7 + $0xa8] sm:$0xff]
    %v426 = vld [vmem:[%s7 + $0xb0] sm:$0xff]
    %v427 = vld [vmem:[%s7 + $0xb8] sm:$0xff]
    %v428 = vld [vmem:[%s7 + $0xc0] sm:$0xff]
    %v429 = vld [vmem:[%s7 + $0xc8] sm:$0xff]
    %v430 = vld [vmem:[%s7 + $0xd0] sm:$0xff]
    %v431 = vld [vmem:[%s7 + $0xd8] sm:$0xff]
    %v432 = vld [vmem:[%s7 + $0xe0] sm:$0xff]
    %v433 = vld [vmem:[%s7 + $0xe8] sm:$0xff]
    %v434 = vld [vmem:[%s7 + $0xf0] sm:$0xff]
    %v435 = vld [vmem:[%s7 + $0xf8] sm:$0xff]
    %437 = vset.pattern.permute.xlu0 0
    %438 = vperm.xlu0 %437, %v418
    %v439 = vpop.permute.xlu0 %438
    %442 = vset.pattern.permute.xlu0 0
    %443 = vperm.xlu0 %442, %v419
    %v444 = vpop.permute.xlu0 %443
    %447 = vset.pattern.permute.xlu0 0
    %448 = vperm.xlu0 %447, %v420
    %v449 = vpop.permute.xlu0 %448
    %452 = vset.pattern.permute.xlu0 0
    %453 = vperm.xlu0 %452, %v421
    %v454 = vpop.permute.xlu0 %453
    %457 = vset.pattern.permute.xlu0 0
    %458 = vperm.xlu0 %457, %v422
    %v459 = vpop.permute.xlu0 %458
    %462 = vset.pattern.permute.xlu0 0
    %463 = vperm.xlu0 %462, %v423
    %v464 = vpop.permute.xlu0 %463
    %467 = vset.pattern.permute.xlu0 0
    %468 = vperm.xlu0 %467, %v424
    %v469 = vpop.permute.xlu0 %468
    %472 = vset.pattern.permute.xlu0 0
    %473 = vperm.xlu0 %472, %v425
    %v474 = vpop.permute.xlu0 %473
    %477 = vset.pattern.permute.xlu0 0
    %478 = vperm.xlu0 %477, %v426
    %v479 = vpop.permute.xlu0 %478
    %482 = vset.pattern.permute.xlu0 0
    %483 = vperm.xlu0 %482, %v427
    %v484 = vpop.permute.xlu0 %483
    %487 = vset.pattern.permute.xlu0 0
    %488 = vperm.xlu0 %487, %v428
    %v489 = vpop.permute.xlu0 %488
    %492 = vset.pattern.permute.xlu0 0
    %493 = vperm.xlu0 %492, %v429
    %v494 = vpop.permute.xlu0 %493
    %497 = vset.pattern.permute.xlu0 0
    %498 = vperm.xlu0 %497, %v430
    %v499 = vpop.permute.xlu0 %498
    %502 = vset.pattern.permute.xlu0 0
    %503 = vperm.xlu0 %502, %v431
    %v504 = vpop.permute.xlu0 %503
    %507 = vset.pattern.permute.xlu0 0
    %508 = vperm.xlu0 %507, %v432
    %v509 = vpop.permute.xlu0 %508
    %512 = vset.pattern.permute.xlu0 0
    %513 = vperm.xlu0 %512, %v433
    %v514 = vpop.permute.xlu0 %513
    %517 = vset.pattern.permute.xlu0 0
    %518 = vperm.xlu0 %517, %v434
    %v519 = vpop.permute.xlu0 %518
    %522 = vset.pattern.permute.xlu0 0
    %523 = vperm.xlu0 %522, %v435
    %v524 = vpop.permute.xlu0 %523
    %v544 = vunpack.c.l.b16 %v395
    %v545 = vunpack.c.l.b16 %v396
    %v546 = vunpack.c.l.b16 %v397
    %v547 = vunpack.c.l.b16 %v398
    %v548 = vunpack.c.l.b16 %v399
    %v549 = vunpack.c.l.b16 %v400
    %v550 = vunpack.c.l.b16 %v401
    %v551 = vunpack.c.l.b16 %v402
    %v552 = vunpack.c.l.b16 %v403
    %v553 = vunpack.c.l.b16 %v404
    %v554 = vunpack.c.l.b16 %v405
    %v555 = vunpack.c.l.b16 %v406
    %v556 = vunpack.c.l.b16 %v407
    %v557 = vunpack.c.l.b16 %v408
    %v558 = vunpack.c.l.b16 %v409
    %v559 = vunpack.c.l.b16 %v410
    %v560 = vunpack.c.l.b16 %v411
    %v561 = vunpack.c.l.b16 %v412
    %v562 = vpack.c.b16 %v545, %v544
    %v563 = vpack.c.b16 %v547, %v546
    %v564 = vpack.c.b16 %v549, %v548
    %v565 = vpack.c.b16 %v551, %v550
    %v566 = vpack.c.b16 %v553, %v552
    %v567 = vpack.c.b16 %v555, %v554
    %v568 = vpack.c.b16 %v557, %v556
    %v569 = vpack.c.b16 %v559, %v558
    %v570 = vpack.c.b16 %v561, %v560
    %vm571 = vcmask 588800
    %v573 = vsel %vm571, %v562, 0
    %v576 = vsel %vm571, %v563, 0
    %v579 = vsel %vm571, %v564, 0
    %v582 = vsel %vm571, %v565, 0
    %v585 = vsel %vm571, %v566, 0
    %v588 = vsel %vm571, %v567, 0
    %v591 = vsel %vm571, %v568, 0
    %v594 = vsel %vm571, %v569, 0
    %v597 = vsel %vm571, %v570, 0
    %vm599 = vcmask 1043456
    %v601 = vsel %vm599, %v417, 0
    %603 = vmatprep.subr.bf16.mxu0 0
    %604 = vmatpush1.bf16.msra.mxu0 0
    %605 = vmatprep.subr.bf16.mxu0 0
    %606 = vmatpush1.bf16.msra.mxu0 0
    %607 = vmatprep.subr.bf16.mxu0 0
    %608 = vmatpush1.bf16.msra.mxu0 0
    %609 = vmatprep.subr.bf16.mxu0 0
    %610 = vmatpush1.bf16.msra.mxu0 %v601
    %611 = vmatprep.subr.bf16.mxu0 0
    %612 = vmatpush1.bf16.msra.mxu0 %v416
    %613 = vmatprep.subr.bf16.mxu0 0
    %614 = vmatpush1.bf16.msra.mxu0 %v415
    %615 = vmatprep.subr.bf16.mxu0 0
    %616 = vmatpush1.bf16.msra.mxu0 %v414
    %617 = vmatprep.subr.bf16.mxu0 0
    %618 = vmatpush1.bf16.msra.mxu0 %v413
    %619 = vmatprep.subr.bf16.mxu0 0
    %620 = vmatpush2.bf16.msra.mxu0 0
    %621 = vmatprep.subr.bf16.mxu0 0
    %622 = vmatpush2.bf16.msra.mxu0 0
    %623 = vmatprep.subr.bf16.mxu0 0
    %624 = vmatpush2.bf16.msra.mxu0 0
    %625 = vmatprep.subr.bf16.mxu0 0
    %626 = vmatpush2.bf16.msra.mxu0 0
    %627 = vmatprep.subr.bf16.mxu0 0
    %628 = vmatpush2.bf16.msra.mxu0 0
    %629 = vmatprep.subr.bf16.mxu0 0
    %630 = vmatpush2.bf16.msra.mxu0 0
    %631 = vmatprep.subr.bf16.mxu0 0
    %632 = vmatpush2.bf16.msra.mxu0 0
    %633 = vmatprep.subr.bf16.mxu0 0
    %634 = vmatpush2.bf16.msra.mxu0 0
    %635 = vmatprep.mubr.bf16.mxu0 0
    %636 = vmatmul.mubr.bf16.gmra.mxu0 %v573
    %v637 = vpop.f32.mrf.mxu0
    %v638 = vadd.f32 %v439, %v637
    %v639 = vpop.f32.mrf.mxu0
    %v640 = vpop.f32.mrf.mxu0
    %v641 = vadd.f32 %v444, %v640
    %v642 = vpop.f32.mrf.mxu0
    %643 = vmatprep.mubr.bf16.mxu0 0
    %644 = vmatmul.mubr.bf16.gmra.mxu0 %v576
    %v645 = vpop.f32.mrf.mxu0
    %v646 = vadd.f32 %v449, %v645
    %v647 = vpop.f32.mrf.mxu0
    %v648 = vpop.f32.mrf.mxu0
    %v649 = vadd.f32 %v454, %v648
    %v650 = vpop.f32.mrf.mxu0
    %651 = vmatprep.mubr.bf16.mxu0 0
    %652 = vmatmul.mubr.bf16.gmra.mxu0 %v579
    %v653 = vpop.f32.mrf.mxu0
    %v654 = vadd.f32 %v459, %v653
    %v655 = vpop.f32.mrf.mxu0
    %v656 = vpop.f32.mrf.mxu0
    %v657 = vadd.f32 %v464, %v656
    %v658 = vpop.f32.mrf.mxu0
    %659 = vmatprep.mubr.bf16.mxu0 0
    %660 = vmatmul.mubr.bf16.gmra.mxu0 %v582
    %v661 = vpop.f32.mrf.mxu0
    %v662 = vadd.f32 %v469, %v661
    %v663 = vpop.f32.mrf.mxu0
    %v664 = vpop.f32.mrf.mxu0
    %v665 = vadd.f32 %v474, %v664
    %v666 = vpop.f32.mrf.mxu0
    %667 = vmatprep.mubr.bf16.mxu0 0
    %668 = vmatmul.mubr.bf16.gmra.mxu0 %v585
    %v669 = vpop.f32.mrf.mxu0
    %v670 = vadd.f32 %v479, %v669
    %v671 = vpop.f32.mrf.mxu0
    %v672 = vpop.f32.mrf.mxu0
    %v673 = vadd.f32 %v484, %v672
    %v674 = vpop.f32.mrf.mxu0
    %675 = vmatprep.mubr.bf16.mxu0 0
    %676 = vmatmul.mubr.bf16.gmra.mxu0 %v588
    %v677 = vpop.f32.mrf.mxu0
    %v678 = vadd.f32 %v489, %v677
    %v679 = vpop.f32.mrf.mxu0
    %v680 = vpop.f32.mrf.mxu0
    %v681 = vadd.f32 %v494, %v680
    %v682 = vpop.f32.mrf.mxu0
    %683 = vmatprep.mubr.bf16.mxu0 0
    %684 = vmatmul.mubr.bf16.gmra.mxu0 %v591
    %v685 = vpop.f32.mrf.mxu0
    %v686 = vadd.f32 %v499, %v685
    %v687 = vpop.f32.mrf.mxu0
    %v688 = vpop.f32.mrf.mxu0
    %v689 = vadd.f32 %v504, %v688
    %v690 = vpop.f32.mrf.mxu0
    %691 = vmatprep.mubr.bf16.mxu0 0
    %692 = vmatmul.mubr.bf16.gmra.mxu0 %v594
    %v693 = vpop.f32.mrf.mxu0
    %v694 = vadd.f32 %v509, %v693
    %v695 = vpop.f32.mrf.mxu0
    %v696 = vpop.f32.mrf.mxu0
    %v697 = vadd.f32 %v514, %v696
    %v698 = vpop.f32.mrf.mxu0
    %699 = vmatprep.mubr.bf16.mxu0 0
    %700 = vmatmul.mubr.bf16.gmra.mxu0 %v597
    %v701 = vpop.f32.mrf.mxu0
    %v702 = vadd.f32 %v519, %v701
    %v703 = vpop.f32.mrf.mxu0
    %v704 = vpop.f32.mrf.mxu0
    %v705 = vadd.f32 %v524, %v704
    %v706 = vpop.f32.mrf.mxu0
    %707 = vdwg.mxu0
    %v708 = vmul.f32 %v638, 0.01
    %v709 = vmul.f32 %v641, 0.01
    %v710 = vmul.f32 %v646, 0.01
    %v711 = vmul.f32 %v649, 0.01
    %v712 = vmul.f32 %v654, 0.01
    %v713 = vmul.f32 %v657, 0.01
    %v714 = vmul.f32 %v662, 0.01
    %v715 = vmul.f32 %v665, 0.01
    %v716 = vmul.f32 %v670, 0.01
    %v717 = vmul.f32 %v673, 0.01
    %v718 = vmul.f32 %v678, 0.01
    %v719 = vmul.f32 %v681, 0.01
    %v720 = vmul.f32 %v686, 0.01
    %v721 = vmul.f32 %v689, 0.01
    %v722 = vmul.f32 %v694, 0.01
    %v723 = vmul.f32 %v697, 0.01
    %v724 = vmul.f32 %v702, 0.01
    %v725 = vmul.f32 %v705, 0.01
    %v726 = vmax.f32 %v638, %v708
    %v727 = vmax.f32 %v641, %v709
    %v728 = vmax.f32 %v646, %v710
    %v729 = vmax.f32 %v649, %v711
    %v730 = vmax.f32 %v654, %v712
    %v731 = vmax.f32 %v657, %v713
    %v732 = vmax.f32 %v662, %v714
    %v733 = vmax.f32 %v665, %v715
    %v734 = vmax.f32 %v670, %v716
    %v735 = vmax.f32 %v673, %v717
    %v736 = vmax.f32 %v678, %v718
    %v737 = vmax.f32 %v681, %v719
    %v738 = vmax.f32 %v686, %v720
    %v739 = vmax.f32 %v689, %v721
    %v740 = vmax.f32 %v694, %v722
    %v741 = vmax.f32 %v697, %v723
    %v742 = vmax.f32 %v702, %v724
    %v743 = vmax.f32 %v705, %v725
    %v744 = vld [vmem:[%s4] sm:$0xff]
    %v745 = vld [vmem:[%s4 + $0x8] sm:$0xff]
    %v746 = vld [vmem:[%s4 + $0x10] sm:$0xff]
    %v747 = vld [vmem:[%s4 + $0x18] sm:$0xff]
    %v748 = vld [vmem:[%s4 + $0x20] sm:$0xff]
    %v749 = vld [vmem:[%s4 + $0x28] sm:$0xff]
    %v750 = vld [vmem:[%s4 + $0x30] sm:$0xff]
    %v751 = vld [vmem:[%s4 + $0x38] sm:$0xff]
    %v752 = vld [vmem:[%s4 + $0x40] sm:$0xff]
    %v753 = vpack.c.bf16 %v727, %v726
    %v754 = vpack.c.bf16 %v729, %v728
    %v755 = vpack.c.bf16 %v731, %v730
    %v756 = vpack.c.bf16 %v733, %v732
    %v757 = vpack.c.bf16 %v735, %v734
    %v758 = vpack.c.bf16 %v737, %v736
    %v759 = vpack.c.bf16 %v739, %v738
    %v760 = vpack.c.bf16 %v741, %v740
    %v761 = vpack.c.bf16 %v743, %v742
    %v762 = vld [vmem:[%s7 + $0x100] sm:$0xff]
    %v763 = vld [vmem:[%s7 + $0x108] sm:$0xff]
    %v764 = vld [vmem:[%s7 + $0x110] sm:$0xff]
    %v765 = vld [vmem:[%s7 + $0x118] sm:$0xff]
    %v766 = vld [vmem:[%s7 + $0x120] sm:$0xff]
    %v767 = vld [vmem:[%s7 + $0x128] sm:$0xff]
    %v768 = vld [vmem:[%s7 + $0x130] sm:$0xff]
    %v769 = vld [vmem:[%s7 + $0x138] sm:$0xff]
    %v770 = vld [vmem:[%s7 + $0x140] sm:$0xff]
    %772 = vset.pattern.permute.xlu0 0
    %773 = vperm.xlu0 %772, %v762
    %v774 = vpop.permute.xlu0 %773
    %777 = vset.pattern.permute.xlu0 0
    %778 = vperm.xlu0 %777, %v763
    %v779 = vpop.permute.xlu0 %778
    %782 = vset.pattern.permute.xlu0 0
    %783 = vperm.xlu0 %782, %v764
    %v784 = vpop.permute.xlu0 %783
    %787 = vset.pattern.permute.xlu0 0
    %788 = vperm.xlu0 %787, %v765
    %v789 = vpop.permute.xlu0 %788
    %792 = vset.pattern.permute.xlu0 0
    %793 = vperm.xlu0 %792, %v766
    %v794 = vpop.permute.xlu0 %793
    %797 = vset.pattern.permute.xlu0 0
    %798 = vperm.xlu0 %797, %v767
    %v799 = vpop.permute.xlu0 %798
    %802 = vset.pattern.permute.xlu0 0
    %803 = vperm.xlu0 %802, %v768
    %v804 = vpop.permute.xlu0 %803
    %807 = vset.pattern.permute.xlu0 0
    %808 = vperm.xlu0 %807, %v769
    %v809 = vpop.permute.xlu0 %808
    %812 = vset.pattern.permute.xlu0 0
    %813 = vperm.xlu0 %812, %v770
    %v814 = vpop.permute.xlu0 %813
    %v825 = vunpack.c.l.b16 %v744
    %v826 = vunpack.c.h.b16 %v744
    %v827 = vunpack.c.l.b16 %v745
    %v828 = vunpack.c.h.b16 %v745
    %v829 = vunpack.c.l.b16 %v746
    %v830 = vunpack.c.h.b16 %v746
    %v831 = vunpack.c.l.b16 %v747
    %v832 = vunpack.c.h.b16 %v747
    %v833 = vunpack.c.l.b16 %v748
    %v834 = vunpack.c.h.b16 %v748
    %v835 = vunpack.c.l.b16 %v749
    %v836 = vunpack.c.h.b16 %v749
    %v837 = vunpack.c.l.b16 %v750
    %v838 = vunpack.c.h.b16 %v750
    %v839 = vunpack.c.l.b16 %v751
    %v840 = vunpack.c.h.b16 %v751
    %v841 = vunpack.c.l.b16 %v752
    %v842 = vunpack.c.h.b16 %v752
    %v843 = vpack.c.b16 %v827, %v825
    %v844 = vpack.c.b16 %v828, %v826
    %v845 = vpack.c.b16 %v831, %v829
    %v846 = vpack.c.b16 %v832, %v830
    %v847 = vpack.c.b16 %v835, %v833
    %v848 = vpack.c.b16 %v836, %v834
    %v849 = vpack.c.b16 %v839, %v837
    %v850 = vpack.c.b16 %v840, %v838
    %v851 = vpack.c.b16 %v841, %v841
    %v852 = vpack.c.b16 %v842, %v842
    %vm858 = vcmask 130048
    %v860 = vsel %vm858, %v844, 0
    %v863 = vsel %vm858, %v846, 0
    %v866 = vsel %vm858, %v848, 0
    %v869 = vsel %vm858, %v850, 0
    %v872 = vsel %vm858, %v852, 0
    %874 = vmatprep.subr.bf16.mxu0 0
    %875 = vmatpush1.bf16.msra.mxu0 %v760
    %876 = vmatprep.subr.bf16.mxu0 0
    %877 = vmatpush1.bf16.msra.mxu0 %v759
    %878 = vmatprep.subr.bf16.mxu0 0
    %879 = vmatpush1.bf16.msra.mxu0 %v758
    %880 = vmatprep.subr.bf16.mxu0 0
    %881 = vmatpush1.bf16.msra.mxu0 %v757
    %882 = vmatprep.subr.bf16.mxu0 0
    %883 = vmatpush1.bf16.msra.mxu0 %v756
    %884 = vmatprep.subr.bf16.mxu0 0
    %885 = vmatpush1.bf16.msra.mxu0 %v755
    %886 = vmatprep.subr.bf16.mxu0 0
    %887 = vmatpush1.bf16.msra.mxu0 %v754
    %888 = vmatprep.subr.bf16.mxu0 0
    %889 = vmatpush1.bf16.msra.mxu0 %v753
    %890 = vmatprep.subr.bf16.mxu0 0
    %891 = vmatpush2.bf16.msra.mxu0 0
    %892 = vmatprep.subr.bf16.mxu0 0
    %893 = vmatpush2.bf16.msra.mxu0 0
    %894 = vmatprep.subr.bf16.mxu0 0
    %895 = vmatpush2.bf16.msra.mxu0 0
    %896 = vmatprep.subr.bf16.mxu0 0
    %897 = vmatpush2.bf16.msra.mxu0 0
    %898 = vmatprep.subr.bf16.mxu0 0
    %899 = vmatpush2.bf16.msra.mxu0 0
    %900 = vmatprep.subr.bf16.mxu0 0
    %901 = vmatpush2.bf16.msra.mxu0 0
    %902 = vmatprep.subr.bf16.mxu0 0
    %903 = vmatpush2.bf16.msra.mxu0 0
    %904 = vmatprep.subr.bf16.mxu0 0
    %905 = vmatpush2.bf16.msra.mxu0 %v761
    %906 = vmatprep.mubr.bf16.mxu0 %v860
    %907 = vmatmul.mubr.bf16.gmra.mxu0 %v843
    %v908 = vpop.f32.mrf.mxu0
    %v909 = vadd.f32 %v774, %v908
    %v910 = vpop.f32.mrf.mxu0
    %v911 = vpop.f32.mrf.mxu0
    %v912 = vadd.f32 %v779, %v911
    %v913 = vpop.f32.mrf.mxu0
    %914 = vmatprep.mubr.bf16.mxu0 %v863
    %915 = vmatmul.mubr.bf16.gmra.mxu0 %v845
    %v916 = vpop.f32.mrf.mxu0
    %v917 = vadd.f32 %v784, %v916
    %v918 = vpop.f32.mrf.mxu0
    %v919 = vpop.f32.mrf.mxu0
    %v920 = vadd.f32 %v789, %v919
    %v921 = vpop.f32.mrf.mxu0
    %922 = vmatprep.mubr.bf16.mxu0 %v866
    %923 = vmatmul.mubr.bf16.gmra.mxu0 %v847
    %v924 = vpop.f32.mrf.mxu0
    %v925 = vadd.f32 %v794, %v924
    %v926 = vpop.f32.mrf.mxu0
    %v927 = vpop.f32.mrf.mxu0
    %v928 = vadd.f32 %v799, %v927
    %v929 = vpop.f32.mrf.mxu0
    %930 = vmatprep.mubr.bf16.mxu0 %v869
    %931 = vmatmul.mubr.bf16.gmra.mxu0 %v849
    %v932 = vpop.f32.mrf.mxu0
    %v933 = vadd.f32 %v804, %v932
    %v934 = vpop.f32.mrf.mxu0
    %v935 = vpop.f32.mrf.mxu0
    %v936 = vadd.f32 %v809, %v935
    %v937 = vpop.f32.mrf.mxu0
    %938 = vmatprep.mubr.bf16.mxu0 %v872
    %939 = vmatmul.mubr.bf16.gmra.mxu0 %v851
    %v940 = vpop.f32.mrf.mxu0
    %v941 = vadd.f32 %v814, %v940
    %v942 = vpop.f32.mrf.mxu0
    %v943 = vpop.f32.mrf.mxu0
    %v944 = vpop.f32.mrf.mxu0
    %945 = vdwg.mxu0
    %v946 = vmul.f32 %v909, 0.01
    %v947 = vmul.f32 %v912, 0.01
    %v948 = vmul.f32 %v917, 0.01
    %v949 = vmul.f32 %v920, 0.01
    %v950 = vmul.f32 %v925, 0.01
    %v951 = vmul.f32 %v928, 0.01
    %v952 = vmul.f32 %v933, 0.01
    %v953 = vmul.f32 %v936, 0.01
    %v954 = vmul.f32 %v941, 0.01
    %v955 = vmax.f32 %v909, %v946
    %v956 = vmax.f32 %v912, %v947
    %v957 = vmax.f32 %v917, %v948
    %v958 = vmax.f32 %v920, %v949
    %v959 = vmax.f32 %v925, %v950
    %v960 = vmax.f32 %v928, %v951
    %v961 = vmax.f32 %v933, %v952
    %v962 = vmax.f32 %v936, %v953
    %v963 = vmax.f32 %v941, %v954
    %v964 = vld [vmem:[%s5] sm:$0xf]
    %v965 = vld [vmem:[%s5 + $0x4] sm:$0xf]
    %v966 = vld [vmem:[%s5 + $0x8] sm:$0xf]
    %v967 = vld [vmem:[%s5 + $0xc] sm:$0xf]
    %v968 = vld [vmem:[%s5 + $0x10] sm:$0x3]
    %v969 = vpack.c.bf16 %v956, %v955
    %v970 = vpack.c.bf16 %v958, %v957
    %v971 = vpack.c.bf16 %v960, %v959
    %v972 = vpack.c.bf16 %v962, %v961
    %v973 = vpack.c.bf16 %v963, %v963
    %v974 = vld [vmem:[%s7 + $0x148] sm:$0xff]
    %v975 = vld [vmem:[%s7 + $0x150] sm:$0xff]
    %v976 = vld [vmem:[%s7 + $0x158] sm:$0xff]
    %v977 = vld [vmem:[%s7 + $0x160] sm:$0xff]
    %v978 = vld [vmem:[%s7 + $0x168] sm:$0xf]
    %980 = vset.pattern.permute.xlu0 0
    %981 = vperm.xlu0 %980, %v974
    %v982 = vpop.permute.xlu0 %981
    %985 = vset.pattern.permute.xlu0 0
    %986 = vperm.xlu0 %985, %v975
    %v987 = vpop.permute.xlu0 %986
    %990 = vset.pattern.permute.xlu0 0
    %991 = vperm.xlu0 %990, %v976
    %v992 = vpop.permute.xlu0 %991
    %995 = vset.pattern.permute.xlu0 0
    %996 = vperm.xlu0 %995, %v977
    %v997 = vpop.permute.xlu0 %996
    %1000 = vset.pattern.permute.xlu0 0
    %1001 = vperm.xlu0 %1000, %v978
    %v1002 = vpop.permute.xlu0 %1001
    %v1009 = vunpack.c.l.b16 %v964
    %v1010 = vunpack.c.l.b16 %v965
    %v1011 = vunpack.c.l.b16 %v966
    %v1012 = vunpack.c.l.b16 %v967
    %v1013 = vunpack.c.l.b16 %v968
    %v1014 = vpack.c.b16 %v1010, %v1009
    %v1015 = vpack.c.b16 %v1012, %v1011
    %v1016 = vpack.c.b16 %v1013, %v1013
    %v1018 = vsel %vm571, %v1014, 0
    %v1021 = vsel %vm571, %v1015, 0
    %v1024 = vsel %vm571, %v1016, 0
    %v1027 = vsel %vm599, %v973, 0
    %1029 = vmatprep.subr.bf16.mxu0 0
    %1030 = vmatpush1.bf16.msra.mxu0 0
    %1031 = vmatprep.subr.bf16.mxu0 0
    %1032 = vmatpush1.bf16.msra.mxu0 0
    %1033 = vmatprep.subr.bf16.mxu0 0
    %1034 = vmatpush1.bf16.msra.mxu0 0
    %1035 = vmatprep.subr.bf16.mxu0 0
    %1036 = vmatpush1.bf16.msra.mxu0 %v1027
    %1037 = vmatprep.subr.bf16.mxu0 0
    %1038 = vmatpush1.bf16.msra.mxu0 %v972
    %1039 = vmatprep.subr.bf16.mxu0 0
    %1040 = vmatpush1.bf16.msra.mxu0 %v971
    %1041 = vmatprep.subr.bf16.mxu0 0
    %1042 = vmatpush1.bf16.msra.mxu0 %v970
    %1043 = vmatprep.subr.bf16.mxu0 0
    %1044 = vmatpush1.bf16.msra.mxu0 %v969
    %1045 = vmatprep.subr.bf16.mxu0 0
    %1046 = vmatpush2.bf16.msra.mxu0 0
    %1047 = vmatprep.subr.bf16.mxu0 0
    %1048 = vmatpush2.bf16.msra.mxu0 0
    %1049 = vmatprep.subr.bf16.mxu0 0
    %1050 = vmatpush2.bf16.msra.mxu0 0
    %1051 = vmatprep.subr.bf16.mxu0 0
    %1052 = vmatpush2.bf16.msra.mxu0 0
    %1053 = vmatprep.subr.bf16.mxu0 0
    %1054 = vmatpush2.bf16.msra.mxu0 0
    %1055 = vmatprep.subr.bf16.mxu0 0
    %1056 = vmatpush2.bf16.msra.mxu0 0
    %1057 = vmatprep.subr.bf16.mxu0 0
    %1058 = vmatpush2.bf16.msra.mxu0 0
    %1059 = vmatprep.subr.bf16.mxu0 0
    %1060 = vmatpush2.bf16.msra.mxu0 0
    %1061 = vmatprep.mubr.bf16.mxu0 0
    %1062 = vmatmul.mubr.bf16.gmra.mxu0 %v1018
    %v1063 = vpop.f32.mrf.mxu0
    %v1064 = vadd.f32 %v982, %v1063
    %v1065 = vpop.f32.mrf.mxu0
    %v1066 = vpop.f32.mrf.mxu0
    %v1067 = vadd.f32 %v987, %v1066
    %v1068 = vpop.f32.mrf.mxu0
    %1069 = vmatprep.mubr.bf16.mxu0 0
    %1070 = vmatmul.mubr.bf16.gmra.mxu0 %v1021
    %v1071 = vpop.f32.mrf.mxu0
    %v1072 = vadd.f32 %v992, %v1071
    %v1073 = vpop.f32.mrf.mxu0
    %v1074 = vpop.f32.mrf.mxu0
    %v1075 = vadd.f32 %v997, %v1074
    %v1076 = vpop.f32.mrf.mxu0
    %1077 = vmatprep.mubr.bf16.mxu0 0
    %1078 = vmatmul.mubr.bf16.gmra.mxu0 %v1024
    %v1079 = vpop.f32.mrf.mxu0
    %v1080 = vadd.f32 %v1002, %v1079
    %v1081 = vpop.f32.mrf.mxu0
    %v1082 = vpop.f32.mrf.mxu0
    %v1083 = vpop.f32.mrf.mxu0
    %1084 = vdwg.mxu0
    %v1085 = vmul.f32 %v1064, 0.01
    %v1086 = vmul.f32 %v1067, 0.01
    %v1087 = vmul.f32 %v1072, 0.01
    %v1088 = vmul.f32 %v1075, 0.01
    %v1089 = vmul.f32 %v1080, 0.01
    %v1090 = vmax.f32 %v1064, %v1085
    %v1091 = vmax.f32 %v1067, %v1086
    %v1092 = vmax.f32 %v1072, %v1087
    %v1093 = vmax.f32 %v1075, %v1088
    %v1094 = vmax.f32 %v1080, %v1089
    %v1095 = vld [vmem:[%s6] sm:$0x1]
    %v1096 = vpack.c.bf16 %v1091, %v1090
    %v1097 = vpack.c.bf16 %v1093, %v1092
    %v1098 = vpack.c.bf16 %v1094, %v1094
    %v1100 = vsel %vm286, %v1095, 0
    %v1103 = vsel %vm125, %v1098, 0
    %1105 = vmatprep.subr.bf16.mxu0 0
    %1106 = vmatpush1.bf16.msra.mxu0 0
    %1107 = vmatprep.subr.bf16.mxu0 0
    %1108 = vmatpush1.bf16.msra.mxu0 0
    %1109 = vmatprep.subr.bf16.mxu0 0
    %1110 = vmatpush1.bf16.msra.mxu0 0
    %1111 = vmatprep.subr.bf16.mxu0 0
    %1112 = vmatpush1.bf16.msra.mxu0 0
    %1113 = vmatprep.subr.bf16.mxu0 0
    %1114 = vmatpush1.bf16.msra.mxu0 0
    %1115 = vmatprep.subr.bf16.mxu0 0
    %1116 = vmatpush1.bf16.msra.mxu0 %v1103
    %1117 = vmatprep.subr.bf16.mxu0 0
    %1118 = vmatpush1.bf16.msra.mxu0 %v1097
    %1119 = vmatprep.subr.bf16.mxu0 0
    %1120 = vmatpush1.bf16.msra.mxu0 %v1096
    %1121 = vmatprep.subr.bf16.mxu0 0
    %1122 = vmatpush2.bf16.msra.mxu0 0
    %1123 = vmatprep.subr.bf16.mxu0 0
    %1124 = vmatpush2.bf16.msra.mxu0 0
    %1125 = vmatprep.subr.bf16.mxu0 0
    %1126 = vmatpush2.bf16.msra.mxu0 0
    %1127 = vmatprep.subr.bf16.mxu0 0
    %1128 = vmatpush2.bf16.msra.mxu0 0
    %1129 = vmatprep.subr.bf16.mxu0 0
    %1130 = vmatpush2.bf16.msra.mxu0 0
    %1131 = vmatprep.subr.bf16.mxu0 0
    %1132 = vmatpush2.bf16.msra.mxu0 0
    %1133 = vmatprep.subr.bf16.mxu0 0
    %1134 = vmatpush2.bf16.msra.mxu0 0
    %1135 = vmatprep.subr.bf16.mxu0 0
    %1136 = vmatpush2.bf16.msra.mxu0 0
    %1137 = vmatprep.mubr.bf16.mxu0 0
    %1138 = vmatmul.mubr.bf16.gmra.mxu0 %v1100
    %v1139 = vpop.f32.mrf.mxu0
    %v1140 = vadd.f32 0.0, %v1139
    %v1141 = vpop.f32.mrf.mxu0
    %v1142 = vpop.f32.mrf.mxu0
    %v1143 = vpop.f32.mrf.mxu0
    %1144 = vdwg.mxu0
    %v1145 = vsub.f32 0.0, %v1140
    %v1146 = vmul.f32 %v1145, 1.442695
    %v1147 = vpow.pop %v1146
    %v1148 = vadd.f32 %v1147, 1.0
    %v1149 = vrcp.pop %v1148
    %vm1150 = vcmask 58368
    %1151 = vst.msk [vmem:[#allocation2] sm:$0x3] %vm1150, %v1149
    // Predicated region
    $region34: #{multiclass_classification_forward.1} parent=1 // pred_check
      _
    $region35: #{multiclass_classification_forward.1} parent=1 // pred_check_branch
      %1153 = sbr.rel (0) target = $region37
    $region36: #{multiclass_classification_forward.1} parent=1 // pred_region
      %s1155 = ssub.s32 32, 32
      %1156 = vsyncadd [#allocation3], %s1155
      %s1158 = sshll.u32 [#allocation2], 4
      %s1159 = int_to_ptr.vmem [resolvable:$true] %s1158
      %1161 = dma.vmem_to_hbm [thread:$0]  %s1159, 32, %s8, [#allocation3]
    $region37: #{multiclass_classification_forward.1} parent=1 // pred_fallthru
      _
    // Predicated region
    $region38: #{multiclass_classification_forward.1} parent=1 // pred_check
      _
    $region39: #{multiclass_classification_forward.1} parent=1 // pred_check_branch
      %1163 = sbr.rel (0) target = $region41
    $region40: #{multiclass_classification_forward.1} parent=1 // pred_region
      %1164 = dma.done [#allocation3], 32
    $region41: #{multiclass_classification_forward.1} parent=1 // pred_fallthru
      _
    %1165 = vsyncpa [#allocation3], 1

</llo_original>
